<compile_context>
chip_gen: v5e
topology: v5e:2x2
jax: 0.10.0
libtpu: 0.0.40
codegen_flags: <defaults>
</compile_context>

<pallas_src>
import functools

import jax
import jax.numpy as jnp
from jax.experimental import pallas as pl
from jax.experimental.pallas import tpu as pltpu


def _round_up(x, m):
    return ((x + m - 1) // m) * m


def _cdiv(a, b):
    return (a + b - 1) // b


def _pick_tile(hw, cin, cout, dtype_bytes, n):
    """Lane tile: multiple of 128, sized from a v7x-safe streaming VMEM budget."""
    if hw <= 128:
        return hw                                   # single block == full extent
    budget = 24 * 1024 * 1024                       # double-buffered x + out stream
    t = budget // (2 * (cin + cout) * dtype_bytes)
    t = max(128, min(t, 8192))
    t = (t // 128) * 128
    t = min(t, _round_up(hw, 128))
    # Keep >= 2 grid blocks so both v7x TensorCores get work under "parallel".
    while n * _cdiv(hw, t) < 2 and t > 128:
        t = max(128, ((t // 2) // 128) * 128)
    return t


# ---------------- Pass 1: x-side statistics (sum_x and Gram = x x^T) ---------
def stats_kernel(x_ref, sum_ref, gram_ref, *, hw, t, ragged):
    """Per (image, pixel-tile) block emit
         sum_p x[:, p]            -> (1, 1, 1, Cin)
         sum_p x[:, p] x[:, p]^T  -> (1, 1, Cin, Cin)
    Ragged HW tail is masked in-kernel, so no HBM padding pass is needed.
    The only HBM traffic is the x read; the MXU contraction is over T."""
    x = x_ref[0]                                    # (Cin, t)
    if ragged:
        j = pl.program_id(1)
        lane = jax.lax.broadcasted_iota(jnp.int32, x.shape, 1)
        x = jnp.where(j * t + lane < hw, x, jnp.zeros_like(x))
    cin = x.shape[0]
    sum_ref[...] = jnp.sum(x.astype(jnp.float32), axis=1).reshape(1, 1, 1, cin)
    gram = jax.lax.dot_general(x, x, (((1,), (1,)), ((), ())),
                               preferred_element_type=jnp.float32)
    gram_ref[...] = gram.reshape(1, 1, cin, cin)


# ---------------- Pass 2: conv + folded BN affine + SiLU ---------------------
def conv_bn_silu_kernel(x_ref, w_ref, scale_ref, shift_ref, o_ref):
    """Per block: 1x1 conv on the MXU (f32 accumulate), folded BatchNorm
    affine, SiLU, lane-dense (Cout, t) store.  Garbage lanes in a ragged last
    block are masked by Pallas' partial-block store (out_shape uses true HW)."""
    y = jnp.dot(w_ref[...], x_ref[0], preferred_element_type=jnp.float32)  # (Cout, t)
    z = y * scale_ref[...] + shift_ref[...]
    # Exact sigmoid (EUP).  TODO(synk): on v7x, if the EUP slot saturates,
    # switch to exp(-z) + pl.reciprocal(approx=True) and/or bf16 output.
    o_ref[...] = (z * jax.nn.sigmoid(z)).astype(o_ref.dtype)[None]


@jax.jit
def feature_processor(x_nchw, conv_w, conv_b, gamma, beta, eps=1e-5):
    """SiLU(BN_train(Conv1x1(x))), NCHW in / NCHW out (matches PyTorch)."""
    N, Cin, H, W = x_nchw.shape
    Cout = conv_w.shape[0]
    HW = H * W
    M = N * HW                       # BN reduction size (true pixel count)
    dtype = x_nchw.dtype
    dtype_bytes = jnp.dtype(dtype).itemsize

    t = _pick_tile(HW, Cin, Cout, dtype_bytes, N)
    num_hw = _cdiv(HW, t)
    ragged = (HW % t) != 0
    grid = (N, num_hw)

    x = x_nchw.reshape(N, Cin, HW)
    w = conv_w.reshape(Cout, Cin).astype(dtype)
    # conv_b intentionally unused: cancels exactly under training-mode BN.

    # Explicit scoped-VMEM limit: streaming estimate + headroom, capped at
    # 48 MiB (safe under v7x's 64 MiB physical VMEM per TensorCore).
    stream_bytes = 2 * (Cin + Cout) * t * dtype_bytes
    resident_bytes = (Cout * Cin + 4 * Cout) * 4
    vmem_limit = int(min(max(stream_bytes + resident_bytes + (2 << 20), 32 << 20),
                         48 << 20))
    cparams = pltpu.CompilerParams(
        dimension_semantics=("parallel", "parallel"),
        vmem_limit_bytes=vmem_limit)

    # ---- Pass 1: per-block x statistics ----------------------------------
    psum, pgram = pl.pallas_call(
        functools.partial(stats_kernel, hw=HW, t=t, ragged=ragged),
        out_shape=(
            jax.ShapeDtypeStruct((N, num_hw, 1, Cin), jnp.float32),
            jax.ShapeDtypeStruct((N, num_hw, Cin, Cin), jnp.float32),
        ),
        grid_spec=pltpu.PrefetchScalarGridSpec(
            num_scalar_prefetch=0,
            grid=grid,
            in_specs=[pl.BlockSpec((1, Cin, t), lambda n, j: (n, 0, j))],
            out_specs=(
                pl.BlockSpec((1, 1, 1, Cin), lambda n, j: (n, j, 0, 0)),
                pl.BlockSpec((1, 1, Cin, Cin), lambda n, j: (n, j, 0, 0)),
            ),
        ),
        compiler_params=cparams,
    )(x)

    # ---- Tiny per-channel BN math in f32 (fused into the jitted program) --
    wf = conv_w.reshape(Cout, Cin).astype(jnp.float32)
    sum_x = jnp.sum(psum, axis=(0, 1, 2))                  # (Cin,)
    gram = jnp.sum(pgram, axis=(0, 1))                     # (Cin, Cin)
    mean_x = sum_x / M
    mean_y = wf @ mean_x                                   # (Cout,)
    cov_x = gram / M - jnp.outer(mean_x, mean_x)           # (Cin, Cin)
    var_y = jnp.maximum(jnp.sum((wf @ cov_x) * wf, axis=1), 0.0)  # biased var
    inv_std = jax.lax.rsqrt(var_y + eps)
    scale_c = gamma.astype(jnp.float32) * inv_std          # (Cout,)
    shift_c = beta.astype(jnp.float32) - mean_y * scale_c  # (Cout,)
    scale = scale_c.reshape(Cout, 1)
    shift = shift_c.reshape(Cout, 1)

    # ---- Pass 2: conv, folded BN affine, SiLU -----------------------------
    out = pl.pallas_call(
        conv_bn_silu_kernel,
        out_shape=jax.ShapeDtypeStruct((N, Cout, HW), dtype),
        grid_spec=pltpu.PrefetchScalarGridSpec(
            num_scalar_prefetch=0,
            grid=grid,
            in_specs=[
                pl.BlockSpec((1, Cin, t), lambda n, j: (n, 0, j)),
                pl.BlockSpec((Cout, Cin), lambda n, j: (0, 0)),
                pl.BlockSpec((Cout, 1), lambda n, j: (0, 0)),
                pl.BlockSpec((Cout, 1), lambda n, j: (0, 0)),
            ],
            out_specs=pl.BlockSpec((1, Cout, t), lambda n, j: (n, 0, j)),
        ),
        compiler_params=cparams,
    )(x, w, scale, shift)

    return out.reshape(N, Cout, H, W)


def _reference(x, conv_w, conv_b, gamma, beta, eps=1e-5):
    """Plain-JAX reference of the PyTorch module (training-mode BN)."""
    Cout = conv_w.shape[0]
    w = conv_w.reshape(Cout, -1)
    y = jnp.einsum('oc,nchw->nohw', w, x) + conv_b.reshape(1, Cout, 1, 1)
    mean = jnp.mean(y, axis=(0, 2, 3), keepdims=True)
    var = jnp.mean((y - mean) ** 2, axis=(0, 2, 3), keepdims=True)  # biased
    z = (y - mean) * jax.lax.rsqrt(var + eps)
    z = z * gamma.reshape(1, Cout, 1, 1) + beta.reshape(1, Cout, 1, 1)
    return z * jax.nn.sigmoid(z)


if __name__ == "__main__":
    key = jax.random.PRNGKey(0)
    k_x, k_w, k_b = jax.random.split(key, 3)

    N, Cin, H, W = 2, 4, 16, 16
    Cout = 32

    x = jax.random.normal(k_x, (N, Cin, H, W), dtype=jnp.float32)
    # Deterministic synthetic parameters (shapes per nn.Conv2d / nn.BatchNorm2d).
    conv_w = 0.1 * jax.random.normal(k_w, (Cout, Cin, 1, 1), dtype=jnp.float32)
    conv_b = 0.05 * jax.random.normal(k_b, (Cout,), dtype=jnp.float32)
    gamma = jnp.ones((Cout,), dtype=jnp.float32)   # BN default init
    beta = jnp.zeros((Cout,), dtype=jnp.float32)   # BN default init

    out = feature_processor(x, conv_w, conv_b, gamma, beta)
    jax.block_until_ready(out)
    assert out.shape == (N, Cout, H, W)

    ref = _reference(x, conv_w, conv_b, gamma, beta)
    jax.block_until_ready(ref)
    max_err = float(jnp.max(jnp.abs(out - ref)))
    assert max_err < 1e-4, f"max abs error {max_err}"

    print("KERNEL_OK")
</pallas_src>

<mosaic_0001>
module attributes {stable_mosaic.version = 11 : i64} {
  func.func @stats_kernel(%arg0: i32, %arg1: i32, %arg2: memref<1x4x256xf32, #tpu.memory_space<vmem>>, %arg3: memref<1x1x1x4xf32, #tpu.memory_space<vmem>>, %arg4: memref<1x1x4x4xf32, #tpu.memory_space<vmem>>) attributes {dimension_semantics = [#tpu.dimension_semantics<parallel>, #tpu.dimension_semantics<parallel>], iteration_bounds = array<i64: 2, 1>, scalar_prefetch = 0 : i64, scratch_operands = 0 : i64, tpu.core_type = #tpu.core_type<tc>, window_params = [{transform_indices = @transform_0, window_bounds = array<i64: 1, 4, 256>}, {transform_indices = @transform_1, window_bounds = array<i64: 1, 1, 1, 4>}, {transform_indices = @transform_2, window_bounds = array<i64: 1, 1, 4, 4>}]} {
    %c0 = arith.constant 0 : index
    %c0_0 = arith.constant 0 : index
    %c0_1 = arith.constant 0 : index
    %0 = vector.load %arg2[%c0, %c0_0, %c0_1] : memref<1x4x256xf32, #tpu.memory_space<vmem>>, vector<1x4x256xf32>
    %1 = vector.shape_cast %0 : vector<1x4x256xf32> to vector<4x256xf32>
    %cst = arith.constant dense<0.000000e+00> : vector<4xf32>
    %2 = vector.multi_reduction <add>, %1, %cst [1] : vector<4x256xf32> to vector<4xf32>
    %3 = vector.shape_cast %2 : vector<4xf32> to vector<1x1x1x4xf32>
    %c0_2 = arith.constant 0 : index
    %c0_3 = arith.constant 0 : index
    %c0_4 = arith.constant 0 : index
    %c0_5 = arith.constant 0 : index
    %4 = vector.load %arg3[%c0_2, %c0_3, %c0_4, %c0_5] : memref<1x1x1x4xf32, #tpu.memory_space<vmem>>, vector<1x1x1x4xf32>
    tpu.vector_store %arg3[%c0_2, %c0_3, %c0_4, %c0_5], %3 {strides = array<i32>} : memref<1x1x1x4xf32, #tpu.memory_space<vmem>>, vector<1x1x1x4xf32>,
    %cst_6 = arith.constant dense<0.000000e+00> : vector<4x4xf32>
    %5 = tpu.matmul %1, %1, %cst_6 {dimension_numbers = #tpu.dot_dimension_numbers<[1], [1], [0], [0], [0, 0, 1, 0], [], []>} : vector<4x256xf32>, vector<4x256xf32>, vector<4x4xf32> -> vector<4x4xf32>
    %6 = vector.shape_cast %5 : vector<4x4xf32> to vector<1x1x4x4xf32>
    %c0_7 = arith.constant 0 : index
    %c0_8 = arith.constant 0 : index
    %c0_9 = arith.constant 0 : index
    %c0_10 = arith.constant 0 : index
    %7 = vector.load %arg4[%c0_7, %c0_8, %c0_9, %c0_10] : memref<1x1x4x4xf32, #tpu.memory_space<vmem>>, vector<1x1x4x4xf32>
    tpu.vector_store %arg4[%c0_7, %c0_8, %c0_9, %c0_10], %6 {strides = array<i32>} : memref<1x1x4x4xf32, #tpu.memory_space<vmem>>, vector<1x1x4x4xf32>,
    return
  }
  func.func @transform_0(%arg0: i32, %arg1: i32) -> (i32, i32, i32) {
    %c0_i32 = arith.constant 0 : i32
    %c0_i32_0 = arith.constant 0 : i32
    return %arg0, %c0_i32, %arg1 : i32, i32, i32
  }
  func.func @transform_1(%arg0: i32, %arg1: i32) -> (i32, i32, i32, i32) {
    %c0_i32 = arith.constant 0 : i32
    %c0_i32_0 = arith.constant 0 : i32
    %c0_i32_1 = arith.constant 0 : i32
    return %arg0, %arg1, %c0_i32, %c0_i32_0 : i32, i32, i32, i32
  }
  func.func @transform_2(%arg0: i32, %arg1: i32) -> (i32, i32, i32, i32) {
    %c0_i32 = arith.constant 0 : i32
    %c0_i32_0 = arith.constant 0 : i32
    %c0_i32_1 = arith.constant 0 : i32
    return %arg0, %arg1, %c0_i32, %c0_i32_0 : i32, i32, i32, i32
  }
}

module attributes {stable_mosaic.version = 11 : i64} {
  func.func @conv_bn_silu_kernel(%arg0: i32, %arg1: i32, %arg2: memref<1x4x256xf32, #tpu.memory_space<vmem>>, %arg3: memref<32x4xf32, #tpu.memory_space<vmem>>, %arg4: memref<32x1xf32, #tpu.memory_space<vmem>>, %arg5: memref<32x1xf32, #tpu.memory_space<vmem>>, %arg6: memref<1x32x256xf32, #tpu.memory_space<vmem>>) attributes {dimension_semantics = [#tpu.dimension_semantics<parallel>, #tpu.dimension_semantics<parallel>], iteration_bounds = array<i64: 2, 1>, scalar_prefetch = 0 : i64, scratch_operands = 0 : i64, tpu.core_type = #tpu.core_type<tc>, window_params = [{transform_indices = @transform_0, window_bounds = array<i64: 1, 4, 256>}, {pipeline_mode = #tpu.pipeline_mode<synchronous>, transform_indices = @transform_1, window_bounds = array<i64: 32, 4>}, {pipeline_mode = #tpu.pipeline_mode<synchronous>, transform_indices = @transform_2, window_bounds = array<i64: 32, 1>}, {pipeline_mode = #tpu.pipeline_mode<synchronous>, transform_indices = @transform_3, window_bounds = array<i64: 32, 1>}, {transform_indices = @transform_4, window_bounds = array<i64: 1, 32, 256>}]} {
    %c0 = arith.constant 0 : index
    %c0_0 = arith.constant 0 : index
    %0 = vector.load %arg3[%c0, %c0_0] : memref<32x4xf32, #tpu.memory_space<vmem>>, vector<32x4xf32>
    %c0_1 = arith.constant 0 : index
    %c0_2 = arith.constant 0 : index
    %c0_3 = arith.constant 0 : index
    %1 = vector.load %arg2[%c0_1, %c0_2, %c0_3] : memref<1x4x256xf32, #tpu.memory_space<vmem>>, vector<1x4x256xf32>
    %2 = vector.shape_cast %1 : vector<1x4x256xf32> to vector<4x256xf32>
    %cst = arith.constant dense<0.000000e+00> : vector<32x256xf32>
    %3 = tpu.matmul %0, %2, %cst {dimension_numbers = #tpu.dot_dimension_numbers<[1], [0], [0], [1], [0, 0, 1, 1], [], []>} : vector<32x4xf32>, vector<4x256xf32>, vector<32x256xf32> -> vector<32x256xf32>
    %c0_4 = arith.constant 0 : index
    %c0_5 = arith.constant 0 : index
    %4 = vector.load %arg4[%c0_4, %c0_5] : memref<32x1xf32, #tpu.memory_space<vmem>>, vector<32x1xf32>
    %5 = vector.broadcast %4 : vector<32x1xf32> to vector<32x256xf32>
    %6 = arith.mulf %3, %5 : vector<32x256xf32>
    %c0_6 = arith.constant 0 : index
    %c0_7 = arith.constant 0 : index
    %7 = vector.load %arg5[%c0_6, %c0_7] : memref<32x1xf32, #tpu.memory_space<vmem>>, vector<32x1xf32>
    %8 = vector.broadcast %7 : vector<32x1xf32> to vector<32x256xf32>
    %9 = arith.addf %6, %8 : vector<32x256xf32>
    %10 = arith.negf %9 : vector<32x256xf32>
    %11 = math.exp %10 : vector<32x256xf32>
    %cst_8 = arith.constant 1.000000e+00 : f32
    %12 = vector.broadcast %cst_8 : f32 to vector<32x256xf32>
    %13 = arith.addf %12, %11 : vector<32x256xf32>
    %14 = arith.divf %12, %13 : vector<32x256xf32>
    %15 = arith.mulf %9, %14 : vector<32x256xf32>
    %16 = vector.shape_cast %15 : vector<32x256xf32> to vector<1x32x256xf32>
    %c0_9 = arith.constant 0 : index
    %c0_10 = arith.constant 0 : index
    %c0_11 = arith.constant 0 : index
    %17 = vector.load %arg6[%c0_9, %c0_10, %c0_11] : memref<1x32x256xf32, #tpu.memory_space<vmem>>, vector<1x32x256xf32>
    tpu.vector_store %arg6[%c0_9, %c0_10, %c0_11], %16 {strides = array<i32>} : memref<1x32x256xf32, #tpu.memory_space<vmem>>, vector<1x32x256xf32>,
    return
  }
  func.func @transform_0(%arg0: i32, %arg1: i32) -> (i32, i32, i32) {
    %c0_i32 = arith.constant 0 : i32
    %c0_i32_0 = arith.constant 0 : i32
    return %arg0, %c0_i32, %arg1 : i32, i32, i32
  }
  func.func @transform_1(%arg0: i32, %arg1: i32) -> (i32, i32) {
    %c0_i32 = arith.constant 0 : i32
    %c0_i32_0 = arith.constant 0 : i32
    %c0_i32_1 = arith.constant 0 : i32
    return %c0_i32, %c0_i32_0 : i32, i32
  }
  func.func @transform_2(%arg0: i32, %arg1: i32) -> (i32, i32) {
    %c0_i32 = arith.constant 0 : i32
    %c0_i32_0 = arith.constant 0 : i32
    %c0_i32_1 = arith.constant 0 : i32
    return %c0_i32, %c0_i32_0 : i32, i32
  }
  func.func @transform_3(%arg0: i32, %arg1: i32) -> (i32, i32) {
    %c0_i32 = arith.constant 0 : i32
    %c0_i32_0 = arith.constant 0 : i32
    %c0_i32_1 = arith.constant 0 : i32
    return %c0_i32, %c0_i32_0 : i32, i32
  }
  func.func @transform_4(%arg0: i32, %arg1: i32) -> (i32, i32, i32) {
    %c0_i32 = arith.constant 0 : i32
    %c0_i32_0 = arith.constant 0 : i32
    return %arg0, %c0_i32, %arg1 : i32, i32, i32
  }
}

</mosaic_0001>

<llo_original>
// kernel: feature_processor.2
$region0: #{feature_processor.2}
  #allocation0 [shape = 'u32[]', space=smem, size = 0x4, offset = 0x4, fixed_abs, tag = 'smem constant byte address 0x4 - core index']
  #allocation1 [shape = 'u32[72,128]{1,0:T(1,128)}', space=vmem, size = 0x9000, scoped, tag = 'internal scratch']
  %s0 = inlined_call_operand.vmem [shape: f32[2,4,256], index: 0, kind: input, shape index: {}]
  %s1 = inlined_call_operand.vmem [shape: f32[2,1,1,4], index: 1, kind: output, shape index: {0}]
  %s2 = inlined_call_operand.vmem [shape: f32[2,1,4,4], index: 2, kind: output, shape index: {1}]
  %3 = xla_tuple %s1, %s2
  %s4 = sld [smem:[#allocation0]]
  $region45: #{feature_processor.2} parent=0
    _
  %s6 = ssub.s32 1, %s4
  %s7 = scalar_select 0, %s6, %s4
  loop: start=0, step=1, limit=4
  $region2: #{feature_processor.2} parent=0 // loop_pre_header
    _
  $region3: #{feature_processor.2} parent=0 // loop_header
    %s9 = sphi 0, %s13
    %p10 = scmp.ge.s32.totalorder %s9, 4
    %s16 = sphi 0, %s28
    %s17 = sphi 0, %s24
    %s18 = sphi 0, %s16
    %s19 = sphi 0, %s17
    %s20 = sphi 0, %s18
    %s21 = sphi 0, %s19
    %s33 = sphi 0, %s35
    %s36 = sphi 0, %s33
    %s37 = sphi 0, %s36
    %s53 = sphi 0, %s37
    %s61 = sphi 0, %s63
    %s64 = sphi 0, %s61
    %s65 = sphi 0, %s64
    %s81 = sphi 0, %s65
    %s89 = sphi 0, %s91
    %s92 = sphi 0, %s89
    %s93 = sphi 0, %s92
    %s109 = sphi 0, %s93
  $region4: #{feature_processor.2} parent=0 // loop_header_branch
    %12 = sbr.rel (%p10) target = $region8
  $region5: #{feature_processor.2} parent=0 // loop_body
    %s14 = ssub.s32 %s9, 1
    %s15 = ssub.s32 %s9, 2
    %s22 = sadd.s32 1, %s17
    %p23 = scmp.ge.s32.totalorder %s22, 1
    %s24 = scalar_select %p23, 0, %s22
    %s25 = sadd.s32 1, %s16
    %s26 = scalar_select %p23, %s25, %s16
    %p27 = scmp.ge.s32.totalorder %s26, 2
    %s28 = scalar_select %p27, 0, %s26
    %s29 = ssub.s32 %s16, %s28
    %s30 = ssub.s32 %s17, %s24
    %s31 = sor.u32 %s29, %s30
    %p32 = scmp.eq.s32.totalorder %s31, 0
    %s34 = sadd.s32 %s33, 1
    %s35 = scalar_select %p32, %s33, %s34
    %p38 = pneg %p32
    %p39 = scmp.eq.s32.totalorder %s9, 1
    %p40 = por %p38, %p39
    %p41 = scmp.ne.s32.totalorder %s33, %s36
    %p42 = scmp.eq.s32.totalorder %s9, 0
    %p43 = por %p41, %p42
    %p44 = scmp.ne.s32.totalorder %s33, %s36
    %p45 = scmp.eq.s32.totalorder %s14, 1
    %p46 = por %p44, %p45
    %p47 = scmp.ne.s32.totalorder %s36, %s37
    %p48 = scmp.eq.s32.totalorder %s14, 0
    %p49 = por %p47, %p48
    %p50 = scmp.ne.s32.totalorder %s36, %s37
    %p51 = scmp.eq.s32.totalorder %s15, 1
    %p52 = por %p50, %p51
    %p54 = scmp.ne.s32.totalorder %s37, %s53
    %p55 = scmp.eq.s32.totalorder %s15, 0
    %p56 = por %p54, %p55
    %s57 = ssub.s32 %s16, %s28
    %s58 = ssub.s32 %s17, %s24
    %s59 = sor.u32 %s57, %s58
    %p60 = scmp.eq.s32.totalorder %s59, 0
    %s62 = sadd.s32 %s61, 1
    %s63 = scalar_select %p60, %s61, %s62
    %p66 = pneg %p60
    %p67 = scmp.eq.s32.totalorder %s9, 1
    %p68 = por %p66, %p67
    %p69 = scmp.ne.s32.totalorder %s61, %s64
    %p70 = scmp.eq.s32.totalorder %s9, 0
    %p71 = por %p69, %p70
    %p72 = scmp.ne.s32.totalorder %s61, %s64
    %p73 = scmp.eq.s32.totalorder %s14, 1
    %p74 = por %p72, %p73
    %p75 = scmp.ne.s32.totalorder %s64, %s65
    %p76 = scmp.eq.s32.totalorder %s14, 0
    %p77 = por %p75, %p76
    %p78 = scmp.ne.s32.totalorder %s64, %s65
    %p79 = scmp.eq.s32.totalorder %s15, 1
    %p80 = por %p78, %p79
    %p82 = scmp.ne.s32.totalorder %s65, %s81
    %p83 = scmp.eq.s32.totalorder %s15, 0
    %p84 = por %p82, %p83
    %s85 = ssub.s32 %s16, %s28
    %s86 = ssub.s32 %s17, %s24
    %s87 = sor.u32 %s85, %s86
    %p88 = scmp.eq.s32.totalorder %s87, 0
    %s90 = sadd.s32 %s89, 1
    %s91 = scalar_select %p88, %s89, %s90
    %p94 = pneg %p88
    %p95 = scmp.eq.s32.totalorder %s9, 1
    %p96 = por %p94, %p95
    %p97 = scmp.ne.s32.totalorder %s89, %s92
    %p98 = scmp.eq.s32.totalorder %s9, 0
    %p99 = por %p97, %p98
    %p100 = scmp.ne.s32.totalorder %s89, %s92
    %p101 = scmp.eq.s32.totalorder %s14, 1
    %p102 = por %p100, %p101
    %p103 = scmp.ne.s32.totalorder %s92, %s93
    %p104 = scmp.eq.s32.totalorder %s14, 0
    %p105 = por %p103, %p104
    %p106 = scmp.ne.s32.totalorder %s92, %s93
    %p107 = scmp.eq.s32.totalorder %s15, 1
    %p108 = por %p106, %p107
    %p110 = scmp.ne.s32.totalorder %s93, %s109
    %p111 = scmp.eq.s32.totalorder %s15, 0
    %p112 = por %p110, %p111
    %p113 = scmp.le.s32.totalorder 1, %s9
    %p114 = scmp.lt.s32.totalorder %s9, 3
    %p115 = pnand %p113, %p114
    %p116 = pneg %p115
    // Predicated region
    $region9: #{feature_processor.2} parent=5 // pred_check
      _
    $region10: #{feature_processor.2} parent=5 // pred_check_branch
      %118 = sbr.rel (%p115) target = $region12
    $region11: #{feature_processor.2} parent=5 // pred_region
      %s119 = ssub.s32 %s9, 1
    $region12: #{feature_processor.2} parent=5 // pred_fallthru
      _
    %p120 = scmp.lt.s32.totalorder %s9, 2
    // Predicated region
    $region13: #{feature_processor.2} parent=5 // pred_check
      %p121 = pneg %p120
    $region14: #{feature_processor.2} parent=5 // pred_check_branch
      %123 = sbr.rel (%p121) target = $region16
    $region15: #{feature_processor.2} parent=5 // pred_region
      // Predicated region
      $region17: #{feature_processor.2} parent=15 // pred_check
        %p124 = pneg %p43
      $region18: #{feature_processor.2} parent=15 // pred_check_branch
        %126 = sbr.rel (%p124) target = $region20
      $region19: #{feature_processor.2} parent=15 // pred_region
        %s127 = smul.u32 2, %s17
        %p128 = scmp.lt.s32.totalorder %s16, 1
        %s129 = scalar_select %p128, %s16, 1
        %p130 = scmp.lt.s32.totalorder %s127, 1
        %s131 = scalar_select %p130, %s127, 1
        %s132 = smul.addr %s129, 2
        %s133 = sadd.s32 %s131, %s132
        %s134 = smul.addr %s133, 4
        %s135 = scalar_lea.vmem %s0, %s134
        %s136 = smul.u32 2, %s17
      $region20: #{feature_processor.2} parent=15 // pred_fallthru
        _
    $region16: #{feature_processor.2} parent=5 // pred_fallthru
      _
    %p137 = scmp.le.s32.totalorder 1, %s9
    %p138 = scmp.lt.s32.totalorder %s9, 3
    %p139 = pnand %p137, %p138
    %p140 = pneg %p139
    // Predicated region
    $region21: #{feature_processor.2} parent=5 // pred_check
      _
    $region22: #{feature_processor.2} parent=5 // pred_check_branch
      %142 = sbr.rel (%p139) target = $region24
    $region23: #{feature_processor.2} parent=5 // pred_region
      %s143 = ssub.s32 %s9, 1
      %s144 = smul.u32 2, %s19
      %p145 = scmp.lt.s32.totalorder %s18, 1
      %s146 = scalar_select %p145, %s18, 1
      %p147 = scmp.lt.s32.totalorder %s144, 1
      %s148 = scalar_select %p147, %s144, 1
      %s149 = smul.addr %s146, 2
      %s150 = sadd.s32 %s148, %s149
      %s151 = smul.addr %s150, 4
      %s152 = scalar_lea.vmem %s0, %s151
      %p153 = pneg %p49
      %p154 = pneg %p46
      %p155 = pneg %p77
      %p156 = pneg %p74
      %p157 = scmp.lt.s32.totalorder %s18, 1
      %s158 = scalar_select %p157, %s18, 1
      %p159 = scmp.lt.s32.totalorder %s19, 0
      %s160 = scalar_select %p159, %s19, 0
      %s161 = sadd.s32 %s160, %s158
      %s162 = scalar_lea.vmem %s1, %s161
      %p163 = pneg %p105
      %p164 = pneg %p102
      %p165 = scmp.lt.s32.totalorder %s18, 1
      %s166 = scalar_select %p165, %s18, 1
      %p167 = scmp.lt.s32.totalorder %s19, 0
      %s168 = scalar_select %p167, %s19, 0
      %s169 = sadd.s32 %s168, %s166
      %s170 = smul.addr %s169, 4
      %s171 = scalar_lea.vmem %s2, %s170
      %s172 = smul.u32 2, %s19
      %p173 = scmp.lt.s32.totalorder %s18, 1
      %s174 = scalar_select %p173, %s18, 1
      %p175 = scmp.lt.s32.totalorder %s172, 1
      %s176 = scalar_select %p175, %s172, 1
      %s177 = smul.addr %s174, 2
      %s178 = sadd.s32 %s176, %s177
      %s179 = smul.addr %s178, 4
      %s180 = scalar_lea.vmem %s0, %s179
      %s181 = smul.u32 2, %s19
      %p182 = scmp.lt.s32.totalorder %s18, 1
      %s183 = scalar_select %p182, %s18, 1
      %p184 = scmp.lt.s32.totalorder %s19, 0
      %s185 = scalar_select %p184, %s19, 0
      %s186 = sadd.s32 %s185, %s183
      %s187 = scalar_lea.vmem %s1, %s186
      %p188 = scmp.lt.s32.totalorder %s18, 1
      %s189 = scalar_select %p188, %s18, 1
      %p190 = scmp.lt.s32.totalorder %s19, 0
      %s191 = scalar_select %p190, %s19, 0
      %s192 = sadd.s32 %s191, %s189
      %s193 = smul.addr %s192, 4
      %s194 = scalar_lea.vmem %s2, %s193
      %v195 = vld [vmem:[%s180] sm:$0xff]
      %197 = vst [vmem:[#allocation1] ss:$2 sm:$0xff] %v195
      %v198 = vld.sshfl [vmem:[#allocation1] sm:$0xff pattern:$0x75316420]
      %v199 = vld.sshfl [vmem:[#allocation1 + $0x8] sm:$0xff pattern:$0x75316420]
      %vm202 = vcmask 1043456
      %v203 = vsel %vm202, %v198, 0.0
      %v204 = vsel %vm202, %v199, 0.0
      %v205 = vadd.f32 %v203, %v204
      %206 = vadd.xlane.f32.xlu0 %v205
      %v207 = vpop.xlane.xlu0 %206
      %v209 = vlaneseq
      %v210 = vand.u32 %v209, 127
      %v211 = vperm.slane %v207, %v210
      %vm213 = vcmask 24576
      %214 = vst.msk [vmem:[%s187] sm:$0x1] %vm213, %v211
      %215 = vst [vmem:[#allocation1] ss:$2 sm:$0xff] %v195
      %v216 = vld.sshfl [vmem:[#allocation1] sm:$0xff pattern:$0x75316420]
      %v217 = vld.sshfl [vmem:[#allocation1 + $0x8] sm:$0xff pattern:$0x75316420]
      %220 = vst [vmem:[#allocation1] ss:$2 sm:$0xff] %v195
      %v221 = vld.sshfl [vmem:[#allocation1] sm:$0xff pattern:$0x75316420]
      %v222 = vld.sshfl [vmem:[#allocation1 + $0x8] sm:$0xff pattern:$0x75316420]
      %225 = vmatpush.xpose.msra.mxu0 0.0
      %226 = vmatpush.xpose.msra.mxu0 0.0
      %227 = vmatpush.xpose.msra.mxu0 0.0
      %228 = vmatpush.xpose.msra.mxu0 0.0
      %229 = vmatpush.xpose.msra.mxu0 0.0
      %230 = vmatpush.xpose.msra.mxu0 0.0
      %231 = vmatpush.xpose.msra.mxu0 0.0
      %232 = vmatpush.xpose.msra.mxu0 0.0
      %233 = vmatpush.xpose.msra.mxu0 0.0
      %234 = vmatpush.xpose.msra.mxu0 0.0
      %235 = vmatpush.xpose.msra.mxu0 0.0
      %236 = vmatpush.xpose.msra.mxu0 0.0
      %237 = vmatpush.xpose.msra.mxu0 0.0
      %238 = vmatpush.xpose.msra.mxu0 0.0
      %239 = vmatpush.xpose.msra.mxu0 0.0
      %240 = vmatpush.xpose.msra.mxu0 %v221
      %241 = vmatmul.f32.gmra.mxu0 %v216
      %v242 = vpop.f32.mrf.mxu0
      %v243 = vadd.f32 0.0, %v242
      %244 = vdwg.mxu0
      %245 = vmatpush.xpose.msra.mxu0 0.0
      %246 = vmatpush.xpose.msra.mxu0 0.0
      %247 = vmatpush.xpose.msra.mxu0 0.0
      %248 = vmatpush.xpose.msra.mxu0 0.0
      %249 = vmatpush.xpose.msra.mxu0 0.0
      %250 = vmatpush.xpose.msra.mxu0 0.0
      %251 = vmatpush.xpose.msra.mxu0 0.0
      %252 = vmatpush.xpose.msra.mxu0 0.0
      %253 = vmatpush.xpose.msra.mxu0 0.0
      %254 = vmatpush.xpose.msra.mxu0 0.0
      %255 = vmatpush.xpose.msra.mxu0 0.0
      %256 = vmatpush.xpose.msra.mxu0 0.0
      %257 = vmatpush.xpose.msra.mxu0 0.0
      %258 = vmatpush.xpose.msra.mxu0 0.0
      %259 = vmatpush.xpose.msra.mxu0 0.0
      %260 = vmatpush.xpose.msra.mxu0 %v222
      %261 = vmatmul.f32.gmra.mxu0 %v217
      %v262 = vpop.f32.mrf.mxu0
      %v263 = vadd.f32 %v243, %v262
      %264 = vdwg.mxu0
      %vm265 = vcmask 27648
      %266 = vst.msk [vmem:[%s194] sm:$0xf] %vm265, %v263
      %p267 = scmp.lt.s32.totalorder %s18, 1
      %s268 = scalar_select %p267, %s18, 1
      %p269 = scmp.lt.s32.totalorder %s19, 0
      %s270 = scalar_select %p269, %s19, 0
      %s271 = sadd.s32 %s270, %s268
      %s272 = scalar_lea.vmem %s1, %s271
      %p273 = scmp.lt.s32.totalorder %s18, 1
      %s274 = scalar_select %p273, %s18, 1
      %p275 = scmp.lt.s32.totalorder %s19, 0
      %s276 = scalar_select %p275, %s19, 0
      %s277 = sadd.s32 %s276, %s274
      %s278 = smul.addr %s277, 4
      %s279 = scalar_lea.vmem %s2, %s278
      // Predicated region
      $region25: #{feature_processor.2} parent=23 // pred_check
        %p280 = pneg %p74
      $region26: #{feature_processor.2} parent=23 // pred_check_branch
        %282 = sbr.rel (%p280) target = $region28
      $region27: #{feature_processor.2} parent=23 // pred_region
        _
      $region28: #{feature_processor.2} parent=23 // pred_fallthru
        _
      // Predicated region
      $region29: #{feature_processor.2} parent=23 // pred_check
        %p283 = pneg %p102
      $region30: #{feature_processor.2} parent=23 // pred_check_branch
        %285 = sbr.rel (%p283) target = $region32
      $region31: #{feature_processor.2} parent=23 // pred_region
        _
      $region32: #{feature_processor.2} parent=23 // pred_fallthru
        _
    $region24: #{feature_processor.2} parent=5 // pred_fallthru
      _
    %p286 = scmp.le.s32.totalorder 2, %s9
    // Predicated region
    $region33: #{feature_processor.2} parent=5 // pred_check
      %p287 = pneg %p286
    $region34: #{feature_processor.2} parent=5 // pred_check_branch
      %289 = sbr.rel (%p287) target = $region36
    $region35: #{feature_processor.2} parent=5 // pred_region
      %s290 = ssub.s32 %s9, 2
      // Predicated region
      $region37: #{feature_processor.2} parent=35 // pred_check
        %p291 = pneg %p80
      $region38: #{feature_processor.2} parent=35 // pred_check_branch
        %293 = sbr.rel (%p291) target = $region40
      $region39: #{feature_processor.2} parent=35 // pred_region
        %p294 = scmp.lt.s32.totalorder %s20, 1
        %s295 = scalar_select %p294, %s20, 1
        %p296 = scmp.lt.s32.totalorder %s21, 0
        %s297 = scalar_select %p296, %s21, 0
        %s298 = sadd.s32 %s297, %s295
        %s299 = scalar_lea.vmem %s1, %s298
      $region40: #{feature_processor.2} parent=35 // pred_fallthru
        _
      // Predicated region
      $region41: #{feature_processor.2} parent=35 // pred_check
        %p300 = pneg %p108
      $region42: #{feature_processor.2} parent=35 // pred_check_branch
        %302 = sbr.rel (%p300) target = $region44
      $region43: #{feature_processor.2} parent=35 // pred_region
        %p303 = scmp.lt.s32.totalorder %s20, 1
        %s304 = scalar_select %p303, %s20, 1
        %p305 = scmp.lt.s32.totalorder %s21, 0
        %s306 = scalar_select %p305, %s21, 0
        %s307 = sadd.s32 %s306, %s304
        %s308 = smul.addr %s307, 4
        %s309 = scalar_lea.vmem %s2, %s308
      $region44: #{feature_processor.2} parent=35 // pred_fallthru
        _
    $region36: #{feature_processor.2} parent=5 // pred_fallthru
      _
  $region6: #{feature_processor.2} parent=0 // loop_footer
    %s13 = sadd.s32 1, %s9
  $region7: #{feature_processor.2} parent=0 // loop_footer_branch
    %8 = sbr.rel target = $region3
  $region8: #{feature_processor.2} parent=0 // loop_exit
    _

// kernel: feature_processor.3
$region0: #{feature_processor.3}
  #allocation0 [shape = 'u32[]', space=smem, size = 0x4, offset = 0x4, fixed_abs, tag = 'smem constant byte address 0x4 - core index']
  #allocation1 [shape = 'u32[72,128]{1,0:T(1,128)}', space=vmem, size = 0x9000, scoped, tag = 'internal scratch']
  %s0 = inlined_call_operand.vmem [shape: f32[2,4,256], index: 0, kind: input, shape index: {}]
  %s1 = inlined_call_operand.vmem [shape: f32[32,4], index: 1, kind: input, shape index: {}]
  %s2 = inlined_call_operand.vmem [shape: f32[32,1], index: 2, kind: input, shape index: {}]
  %s3 = inlined_call_operand.vmem [shape: f32[32,1], index: 3, kind: input, shape index: {}]
  %s4 = inlined_call_operand.vmem [shape: f32[2,32,256], index: 4, kind: output, shape index: {}]
  %s5 = sld [smem:[#allocation0]]
  $region49: #{feature_processor.3} parent=0
    _
  %s7 = ssub.s32 1, %s5
  %s8 = scalar_select 0, %s7, %s5
  loop: start=0, step=1, limit=4
  $region2: #{feature_processor.3} parent=0 // loop_pre_header
    _
  $region3: #{feature_processor.3} parent=0 // loop_header
    %s10 = sphi 0, %s14
    %p11 = scmp.ge.s32.totalorder %s10, 4
    %s17 = sphi 0, %s29
    %s18 = sphi 0, %s25
    %s19 = sphi 0, %s17
    %s20 = sphi 0, %s18
    %s21 = sphi 0, %s19
    %s22 = sphi 0, %s20
    %s34 = sphi 0, %s36
    %s37 = sphi 0, %s34
    %s38 = sphi 0, %s37
    %s54 = sphi 0, %s38
    %s58 = sphi 0, %s58
    %s60 = sphi 0, %s58
    %s61 = sphi 0, %s60
    %s75 = sphi 0, %s61
    %s79 = sphi 0, %s79
    %s81 = sphi 0, %s79
    %s82 = sphi 0, %s81
    %s96 = sphi 0, %s82
    %s100 = sphi 0, %s100
    %s102 = sphi 0, %s100
    %s103 = sphi 0, %s102
    %s117 = sphi 0, %s103
    %s125 = sphi 0, %s127
    %s128 = sphi 0, %s125
    %s129 = sphi 0, %s128
    %s145 = sphi 0, %s129
  $region4: #{feature_processor.3} parent=0 // loop_header_branch
    %13 = sbr.rel (%p11) target = $region8
  $region5: #{feature_processor.3} parent=0 // loop_body
    %s15 = ssub.s32 %s10, 1
    %s16 = ssub.s32 %s10, 2
    %s23 = sadd.s32 1, %s18
    %p24 = scmp.ge.s32.totalorder %s23, 1
    %s25 = scalar_select %p24, 0, %s23
    %s26 = sadd.s32 1, %s17
    %s27 = scalar_select %p24, %s26, %s17
    %p28 = scmp.ge.s32.totalorder %s27, 2
    %s29 = scalar_select %p28, 0, %s27
    %s30 = ssub.s32 %s17, %s29
    %s31 = ssub.s32 %s18, %s25
    %s32 = sor.u32 %s30, %s31
    %p33 = scmp.eq.s32.totalorder %s32, 0
    %s35 = sadd.s32 %s34, 1
    %s36 = scalar_select %p33, %s34, %s35
    %p39 = pneg %p33
    %p40 = scmp.eq.s32.totalorder %s10, 1
    %p41 = por %p39, %p40
    %p42 = scmp.ne.s32.totalorder %s34, %s37
    %p43 = scmp.eq.s32.totalorder %s10, 0
    %p44 = por %p42, %p43
    %p45 = scmp.ne.s32.totalorder %s34, %s37
    %p46 = scmp.eq.s32.totalorder %s15, 1
    %p47 = por %p45, %p46
    %p48 = scmp.ne.s32.totalorder %s37, %s38
    %p49 = scmp.eq.s32.totalorder %s15, 0
    %p50 = por %p48, %p49
    %p51 = scmp.ne.s32.totalorder %s37, %s38
    %p52 = scmp.eq.s32.totalorder %s16, 1
    %p53 = por %p51, %p52
    %p55 = scmp.ne.s32.totalorder %s38, %s54
    %p56 = scmp.eq.s32.totalorder %s16, 0
    %p57 = por %p55, %p56
    %s59 = sadd.s32 %s58, 1
    %p62 = scmp.eq.s32.totalorder %s10, 1
    %p63 = scmp.ne.s32.totalorder %s58, %s60
    %p64 = scmp.eq.s32.totalorder %s10, 0
    %p65 = por %p63, %p64
    %p66 = scmp.ne.s32.totalorder %s58, %s60
    %p67 = scmp.eq.s32.totalorder %s15, 1
    %p68 = por %p66, %p67
    %p69 = scmp.ne.s32.totalorder %s60, %s61
    %p70 = scmp.eq.s32.totalorder %s15, 0
    %p71 = por %p69, %p70
    %p72 = scmp.ne.s32.totalorder %s60, %s61
    %p73 = scmp.eq.s32.totalorder %s16, 1
    %p74 = por %p72, %p73
    %p76 = scmp.ne.s32.totalorder %s61, %s75
    %p77 = scmp.eq.s32.totalorder %s16, 0
    %p78 = por %p76, %p77
    %s80 = sadd.s32 %s79, 1
    %p83 = scmp.eq.s32.totalorder %s10, 1
    %p84 = scmp.ne.s32.totalorder %s79, %s81
    %p85 = scmp.eq.s32.totalorder %s10, 0
    %p86 = por %p84, %p85
    %p87 = scmp.ne.s32.totalorder %s79, %s81
    %p88 = scmp.eq.s32.totalorder %s15, 1
    %p89 = por %p87, %p88
    %p90 = scmp.ne.s32.totalorder %s81, %s82
    %p91 = scmp.eq.s32.totalorder %s15, 0
    %p92 = por %p90, %p91
    %p93 = scmp.ne.s32.totalorder %s81, %s82
    %p94 = scmp.eq.s32.totalorder %s16, 1
    %p95 = por %p93, %p94
    %p97 = scmp.ne.s32.totalorder %s82, %s96
    %p98 = scmp.eq.s32.totalorder %s16, 0
    %p99 = por %p97, %p98
    %s101 = sadd.s32 %s100, 1
    %p104 = scmp.eq.s32.totalorder %s10, 1
    %p105 = scmp.ne.s32.totalorder %s100, %s102
    %p106 = scmp.eq.s32.totalorder %s10, 0
    %p107 = por %p105, %p106
    %p108 = scmp.ne.s32.totalorder %s100, %s102
    %p109 = scmp.eq.s32.totalorder %s15, 1
    %p110 = por %p108, %p109
    %p111 = scmp.ne.s32.totalorder %s102, %s103
    %p112 = scmp.eq.s32.totalorder %s15, 0
    %p113 = por %p111, %p112
    %p114 = scmp.ne.s32.totalorder %s102, %s103
    %p115 = scmp.eq.s32.totalorder %s16, 1
    %p116 = por %p114, %p115
    %p118 = scmp.ne.s32.totalorder %s103, %s117
    %p119 = scmp.eq.s32.totalorder %s16, 0
    %p120 = por %p118, %p119
    %s121 = ssub.s32 %s17, %s29
    %s122 = ssub.s32 %s18, %s25
    %s123 = sor.u32 %s121, %s122
    %p124 = scmp.eq.s32.totalorder %s123, 0
    %s126 = sadd.s32 %s125, 1
    %s127 = scalar_select %p124, %s125, %s126
    %p130 = pneg %p124
    %p131 = scmp.eq.s32.totalorder %s10, 1
    %p132 = por %p130, %p131
    %p133 = scmp.ne.s32.totalorder %s125, %s128
    %p134 = scmp.eq.s32.totalorder %s10, 0
    %p135 = por %p133, %p134
    %p136 = scmp.ne.s32.totalorder %s125, %s128
    %p137 = scmp.eq.s32.totalorder %s15, 1
    %p138 = por %p136, %p137
    %p139 = scmp.ne.s32.totalorder %s128, %s129
    %p140 = scmp.eq.s32.totalorder %s15, 0
    %p141 = por %p139, %p140
    %p142 = scmp.ne.s32.totalorder %s128, %s129
    %p143 = scmp.eq.s32.totalorder %s16, 1
    %p144 = por %p142, %p143
    %p146 = scmp.ne.s32.totalorder %s129, %s145
    %p147 = scmp.eq.s32.totalorder %s16, 0
    %p148 = por %p146, %p147
    %p149 = scmp.le.s32.totalorder 1, %s10
    %p150 = scmp.lt.s32.totalorder %s10, 3
    %p151 = pnand %p149, %p150
    %p152 = pneg %p151
    // Predicated region
    $region9: #{feature_processor.3} parent=5 // pred_check
      _
    $region10: #{feature_processor.3} parent=5 // pred_check_branch
      %154 = sbr.rel (%p151) target = $region12
    $region11: #{feature_processor.3} parent=5 // pred_region
      %s155 = ssub.s32 %s10, 1
      // Predicated region
      $region13: #{feature_processor.3} parent=11 // pred_check
        %p156 = pneg %p71
      $region14: #{feature_processor.3} parent=11 // pred_check_branch
        %158 = sbr.rel (%p156) target = $region16
      $region15: #{feature_processor.3} parent=11 // pred_region
        _
      $region16: #{feature_processor.3} parent=11 // pred_fallthru
        _
      // Predicated region
      $region17: #{feature_processor.3} parent=11 // pred_check
        %p159 = pneg %p92
      $region18: #{feature_processor.3} parent=11 // pred_check_branch
        %161 = sbr.rel (%p159) target = $region20
      $region19: #{feature_processor.3} parent=11 // pred_region
        _
      $region20: #{feature_processor.3} parent=11 // pred_fallthru
        _
      // Predicated region
      $region21: #{feature_processor.3} parent=11 // pred_check
        %p162 = pneg %p113
      $region22: #{feature_processor.3} parent=11 // pred_check_branch
        %164 = sbr.rel (%p162) target = $region24
      $region23: #{feature_processor.3} parent=11 // pred_region
        _
      $region24: #{feature_processor.3} parent=11 // pred_fallthru
        _
    $region12: #{feature_processor.3} parent=5 // pred_fallthru
      _
    %p165 = scmp.lt.s32.totalorder %s10, 2
    // Predicated region
    $region25: #{feature_processor.3} parent=5 // pred_check
      %p166 = pneg %p165
    $region26: #{feature_processor.3} parent=5 // pred_check_branch
      %168 = sbr.rel (%p166) target = $region28
    $region27: #{feature_processor.3} parent=5 // pred_region
      // Predicated region
      $region29: #{feature_processor.3} parent=27 // pred_check
        %p169 = pneg %p44
      $region30: #{feature_processor.3} parent=27 // pred_check_branch
        %171 = sbr.rel (%p169) target = $region32
      $region31: #{feature_processor.3} parent=27 // pred_region
        %s172 = smul.u32 2, %s18
        %p173 = scmp.lt.s32.totalorder %s17, 1
        %s174 = scalar_select %p173, %s17, 1
        %p175 = scmp.lt.s32.totalorder %s172, 1
        %s176 = scalar_select %p175, %s172, 1
        %s177 = smul.addr %s174, 2
        %s178 = sadd.s32 %s176, %s177
        %s179 = smul.addr %s178, 4
        %s180 = scalar_lea.vmem %s0, %s179
        %s181 = smul.u32 2, %s18
      $region32: #{feature_processor.3} parent=27 // pred_fallthru
        _
    $region28: #{feature_processor.3} parent=5 // pred_fallthru
      _
    %p182 = scmp.le.s32.totalorder 1, %s10
    %p183 = scmp.lt.s32.totalorder %s10, 3
    %p184 = pnand %p182, %p183
    %p185 = pneg %p184
    // Predicated region
    $region33: #{feature_processor.3} parent=5 // pred_check
      _
    $region34: #{feature_processor.3} parent=5 // pred_check_branch
      %187 = sbr.rel (%p184) target = $region36
    $region35: #{feature_processor.3} parent=5 // pred_region
      %s188 = ssub.s32 %s10, 1
      %s189 = smul.u32 2, %s20
      %p190 = scmp.lt.s32.totalorder %s19, 1
      %s191 = scalar_select %p190, %s19, 1
      %p192 = scmp.lt.s32.totalorder %s189, 1
      %s193 = scalar_select %p192, %s189, 1
      %s194 = smul.addr %s191, 2
      %s195 = sadd.s32 %s193, %s194
      %s196 = smul.addr %s195, 4
      %s197 = scalar_lea.vmem %s0, %s196
      %p198 = pneg %p50
      %p199 = pneg %p47
      %p200 = pneg %p71
      %p201 = pneg %p68
      %p202 = pneg %p92
      %p203 = pneg %p89
      %p204 = pneg %p113
      %p205 = pneg %p110
      %p206 = pneg %p141
      %p207 = pneg %p138
      %s208 = smul.u32 2, %s20
      %p209 = scmp.lt.s32.totalorder %s19, 1
      %s210 = scalar_select %p209, %s19, 1
      %p211 = scmp.lt.s32.totalorder %s208, 1
      %s212 = scalar_select %p211, %s208, 1
      %s213 = smul.addr %s210, 8
      %s214 = sadd.s32 %s212, %s213
      %s215 = smul.addr %s214, 8
      %s216 = scalar_lea.vmem %s4, %s215
      %s217 = smul.u32 2, %s20
      %p218 = scmp.lt.s32.totalorder %s19, 1
      %s219 = scalar_select %p218, %s19, 1
      %p220 = scmp.lt.s32.totalorder %s217, 1
      %s221 = scalar_select %p220, %s217, 1
      %s222 = smul.addr %s219, 2
      %s223 = sadd.s32 %s221, %s222
      %s224 = smul.addr %s223, 4
      %s225 = scalar_lea.vmem %s0, %s224
      %s226 = smul.u32 2, %s20
      %s227 = smul.u32 2, %s20
      %p228 = scmp.lt.s32.totalorder %s19, 1
      %s229 = scalar_select %p228, %s19, 1
      %p230 = scmp.lt.s32.totalorder %s227, 1
      %s231 = scalar_select %p230, %s227, 1
      %s232 = smul.addr %s229, 8
      %s233 = sadd.s32 %s231, %s232
      %s234 = smul.addr %s233, 8
      %s235 = scalar_lea.vmem %s4, %s234
      %s236 = smul.u32 2, %s20
      %v237 = vld [vmem:[%s1] sm:$0xff]
      %v238 = vld [vmem:[%s1 + $0x8] sm:$0xff]
      %v239 = vld [vmem:[%s1 + $0x10] sm:$0xff]
      %v240 = vld [vmem:[%s1 + $0x18] sm:$0xff]
      %v241 = vld [vmem:[%s225] sm:$0xff]
      %243 = vst [vmem:[#allocation1] ss:$2 sm:$0xff] %v241
      %v244 = vld.sshfl [vmem:[#allocation1] sm:$0xff pattern:$0x75316420]
      %v245 = vld.sshfl [vmem:[#allocation1 + $0x8] sm:$0xff pattern:$0x75316420]
      %vm246 = vcmask 31744
      %v248 = vsel %vm246, %v237, 0
      %v251 = vsel %vm246, %v238, 0
      %v254 = vsel %vm246, %v239, 0
      %v257 = vsel %vm246, %v240, 0
      %vm259 = vcmask 1043456
      %v260 = vsel %vm259, %v244, 0
      %v262 = vsel %vm259, %v245, 0
      %264 = vmatpush.msra.mxu0 0.0
      %265 = vmatpush.msra.mxu0 0.0
      %266 = vmatpush.msra.mxu0 0.0
      %267 = vmatpush.msra.mxu0 0.0
      %268 = vmatpush.msra.mxu0 0.0
      %269 = vmatpush.msra.mxu0 0.0
      %270 = vmatpush.msra.mxu0 0.0
      %271 = vmatpush.msra.mxu0 0.0
      %272 = vmatpush.msra.mxu0 0.0
      %273 = vmatpush.msra.mxu0 0.0
      %274 = vmatpush.msra.mxu0 0.0
      %275 = vmatpush.msra.mxu0 0.0
      %276 = vmatpush.msra.mxu0 0.0
      %277 = vmatpush.msra.mxu0 0.0
      %278 = vmatpush.msra.mxu0 0.0
      %279 = vmatpush.msra.mxu0 %v260
      %280 = vmatmul.f32.gmra.mxu0 %v248
      %v281 = vpop.f32.mrf.mxu0
      %v282 = vadd.f32 0.0, %v281
      %283 = vmatmul.f32.gmra.mxu0 %v251
      %v284 = vpop.f32.mrf.mxu0
      %v285 = vadd.f32 0.0, %v284
      %286 = vmatmul.f32.gmra.mxu0 %v254
      %v287 = vpop.f32.mrf.mxu0
      %v288 = vadd.f32 0.0, %v287
      %289 = vmatmul.f32.gmra.mxu0 %v257
      %v290 = vpop.f32.mrf.mxu0
      %v291 = vadd.f32 0.0, %v290
      %292 = vdwg.mxu0
      %293 = vmatpush.msra.mxu0 0.0
      %294 = vmatpush.msra.mxu0 0.0
      %295 = vmatpush.msra.mxu0 0.0
      %296 = vmatpush.msra.mxu0 0.0
      %297 = vmatpush.msra.mxu0 0.0
      %298 = vmatpush.msra.mxu0 0.0
      %299 = vmatpush.msra.mxu0 0.0
      %300 = vmatpush.msra.mxu0 0.0
      %301 = vmatpush.msra.mxu0 0.0
      %302 = vmatpush.msra.mxu0 0.0
      %303 = vmatpush.msra.mxu0 0.0
      %304 = vmatpush.msra.mxu0 0.0
      %305 = vmatpush.msra.mxu0 0.0
      %306 = vmatpush.msra.mxu0 0.0
      %307 = vmatpush.msra.mxu0 0.0
      %308 = vmatpush.msra.mxu0 %v262
      %309 = vmatmul.f32.gmra.mxu0 %v248
      %v310 = vpop.f32.mrf.mxu0
      %v311 = vadd.f32 0.0, %v310
      %312 = vmatmul.f32.gmra.mxu0 %v251
      %v313 = vpop.f32.mrf.mxu0
      %v314 = vadd.f32 0.0, %v313
      %315 = vmatmul.f32.gmra.mxu0 %v254
      %v316 = vpop.f32.mrf.mxu0
      %v317 = vadd.f32 0.0, %v316
      %318 = vmatmul.f32.gmra.mxu0 %v257
      %v319 = vpop.f32.mrf.mxu0
      %v320 = vadd.f32 0.0, %v319
      %321 = vdwg.mxu0
      %v322 = vld [vmem:[%s2] sm:$0xff]
      %v323 = vld [vmem:[%s2 + $0x8] sm:$0xff]
      %v324 = vld [vmem:[%s2 + $0x10] sm:$0xff]
      %v325 = vld [vmem:[%s2 + $0x18] sm:$0xff]
      %327 = vset.pattern.permute.xlu0 0
      %328 = vperm.xlu0 %327, %v322
      %v329 = vpop.permute.xlu0 %328
      %332 = vset.pattern.permute.xlu0 0
      %333 = vperm.xlu0 %332, %v323
      %v334 = vpop.permute.xlu0 %333
      %337 = vset.pattern.permute.xlu0 0
      %338 = vperm.xlu0 %337, %v324
      %v339 = vpop.permute.xlu0 %338
      %342 = vset.pattern.permute.xlu0 0
      %343 = vperm.xlu0 %342, %v325
      %v344 = vpop.permute.xlu0 %343
      %v346 = vmul.f32 %v282, %v329
      %v347 = vmul.f32 %v311, %v329
      %v348 = vmul.f32 %v285, %v334
      %v349 = vmul.f32 %v314, %v334
      %v350 = vmul.f32 %v288, %v339
      %v351 = vmul.f32 %v317, %v339
      %v352 = vmul.f32 %v291, %v344
      %v353 = vmul.f32 %v320, %v344
      %v354 = vld [vmem:[%s3] sm:$0xff]
      %v355 = vld [vmem:[%s3 + $0x8] sm:$0xff]
      %v356 = vld [vmem:[%s3 + $0x10] sm:$0xff]
      %v357 = vld [vmem:[%s3 + $0x18] sm:$0xff]
      %359 = vset.pattern.permute.xlu0 0
      %360 = vperm.xlu0 %359, %v354
      %v361 = vpop.permute.xlu0 %360
      %364 = vset.pattern.permute.xlu0 0
      %365 = vperm.xlu0 %364, %v355
      %v366 = vpop.permute.xlu0 %365
      %369 = vset.pattern.permute.xlu0 0
      %370 = vperm.xlu0 %369, %v356
      %v371 = vpop.permute.xlu0 %370
      %374 = vset.pattern.permute.xlu0 0
      %375 = vperm.xlu0 %374, %v357
      %v376 = vpop.permute.xlu0 %375
      %v378 = vadd.f32 %v346, %v361
      %v379 = vadd.f32 %v347, %v361
      %v380 = vadd.f32 %v348, %v366
      %v381 = vadd.f32 %v349, %v366
      %v382 = vadd.f32 %v350, %v371
      %v383 = vadd.f32 %v351, %v371
      %v384 = vadd.f32 %v352, %v376
      %v385 = vadd.f32 %v353, %v376
      %v386 = vxor.u32 %v378, 2147483648
      %v387 = vxor.u32 %v379, 2147483648
      %v388 = vxor.u32 %v380, 2147483648
      %v389 = vxor.u32 %v381, 2147483648
      %v390 = vxor.u32 %v382, 2147483648
      %v391 = vxor.u32 %v383, 2147483648
      %v392 = vxor.u32 %v384, 2147483648
      %v393 = vxor.u32 %v385, 2147483648
      %v394 = vmul.f32 %v386, 1.442695
      %v395 = vpow.pop %v394
      %v396 = vmul.f32 %v387, 1.442695
      %v397 = vpow.pop %v396
      %v398 = vmul.f32 %v388, 1.442695
      %v399 = vpow.pop %v398
      %v400 = vmul.f32 %v389, 1.442695
      %v401 = vpow.pop %v400
      %v402 = vmul.f32 %v390, 1.442695
      %v403 = vpow.pop %v402
      %v404 = vmul.f32 %v391, 1.442695
      %v405 = vpow.pop %v404
      %v406 = vmul.f32 %v392, 1.442695
      %v407 = vpow.pop %v406
      %v408 = vmul.f32 %v393, 1.442695
      %v409 = vpow.pop %v408
      %v410 = vadd.f32 %v395, 1.0
      %v411 = vadd.f32 %v397, 1.0
      %v412 = vadd.f32 %v399, 1.0
      %v413 = vadd.f32 %v401, 1.0
      %v414 = vadd.f32 %v403, 1.0
      %v415 = vadd.f32 %v405, 1.0
      %v416 = vadd.f32 %v407, 1.0
      %v417 = vadd.f32 %v409, 1.0
      %v418 = vrcp.pop %v410
      %v419 = vmul.f32 %v410, %v418
      %v420 = vsub.f32 1.0, %v419
      %v421 = vmul.f32 %v418, %v420
      %v422 = vadd.f32 %v418, %v421
      %vm423 = vweird.f32 %v410
      %vm424 = vweird.f32 %v418
      %vm425 = vmor %vm423, %vm424
      %v426 = vsel %vm425, %v418, %v422
      %v427 = vand.u32 2147483647, %v410
      %vm428 = vcmp.eq.f32.partialorder %v427, 8.507059e+37
      %v429 = vand.u32 %v410, 2147483648
      %v430 = vor.u32 1.1754944e-38, %v429
      %v431 = vsel %vm428, %v430, %v426
      %v432 = vmul.f32 1.0, %v431
      %v433 = vrcp.pop %v411
      %v434 = vmul.f32 %v411, %v433
      %v435 = vsub.f32 1.0, %v434
      %v436 = vmul.f32 %v433, %v435
      %v437 = vadd.f32 %v433, %v436
      %vm438 = vweird.f32 %v411
      %vm439 = vweird.f32 %v433
      %vm440 = vmor %vm438, %vm439
      %v441 = vsel %vm440, %v433, %v437
      %v442 = vand.u32 2147483647, %v411
      %vm443 = vcmp.eq.f32.partialorder %v442, 8.507059e+37
      %v444 = vand.u32 %v411, 2147483648
      %v445 = vor.u32 1.1754944e-38, %v444
      %v446 = vsel %vm443, %v445, %v441
      %v447 = vmul.f32 1.0, %v446
      %v448 = vrcp.pop %v412
      %v449 = vmul.f32 %v412, %v448
      %v450 = vsub.f32 1.0, %v449
      %v451 = vmul.f32 %v448, %v450
      %v452 = vadd.f32 %v448, %v451
      %vm453 = vweird.f32 %v412
      %vm454 = vweird.f32 %v448
      %vm455 = vmor %vm453, %vm454
      %v456 = vsel %vm455, %v448, %v452
      %v457 = vand.u32 2147483647, %v412
      %vm458 = vcmp.eq.f32.partialorder %v457, 8.507059e+37
      %v459 = vand.u32 %v412, 2147483648
      %v460 = vor.u32 1.1754944e-38, %v459
      %v461 = vsel %vm458, %v460, %v456
      %v462 = vmul.f32 1.0, %v461
      %v463 = vrcp.pop %v413
      %v464 = vmul.f32 %v413, %v463
      %v465 = vsub.f32 1.0, %v464
      %v466 = vmul.f32 %v463, %v465
      %v467 = vadd.f32 %v463, %v466
      %vm468 = vweird.f32 %v413
      %vm469 = vweird.f32 %v463
      %vm470 = vmor %vm468, %vm469
      %v471 = vsel %vm470, %v463, %v467
      %v472 = vand.u32 2147483647, %v413
      %vm473 = vcmp.eq.f32.partialorder %v472, 8.507059e+37
      %v474 = vand.u32 %v413, 2147483648
      %v475 = vor.u32 1.1754944e-38, %v474
      %v476 = vsel %vm473, %v475, %v471
      %v477 = vmul.f32 1.0, %v476
      %v478 = vrcp.pop %v414
      %v479 = vmul.f32 %v414, %v478
      %v480 = vsub.f32 1.0, %v479
      %v481 = vmul.f32 %v478, %v480
      %v482 = vadd.f32 %v478, %v481
      %vm483 = vweird.f32 %v414
      %vm484 = vweird.f32 %v478
      %vm485 = vmor %vm483, %vm484
      %v486 = vsel %vm485, %v478, %v482
      %v487 = vand.u32 2147483647, %v414
      %vm488 = vcmp.eq.f32.partialorder %v487, 8.507059e+37
      %v489 = vand.u32 %v414, 2147483648
      %v490 = vor.u32 1.1754944e-38, %v489
      %v491 = vsel %vm488, %v490, %v486
      %v492 = vmul.f32 1.0, %v491
      %v493 = vrcp.pop %v415
      %v494 = vmul.f32 %v415, %v493
      %v495 = vsub.f32 1.0, %v494
      %v496 = vmul.f32 %v493, %v495
      %v497 = vadd.f32 %v493, %v496
      %vm498 = vweird.f32 %v415
      %vm499 = vweird.f32 %v493
      %vm500 = vmor %vm498, %vm499
      %v501 = vsel %vm500, %v493, %v497
      %v502 = vand.u32 2147483647, %v415
      %vm503 = vcmp.eq.f32.partialorder %v502, 8.507059e+37
      %v504 = vand.u32 %v415, 2147483648
      %v505 = vor.u32 1.1754944e-38, %v504
      %v506 = vsel %vm503, %v505, %v501
      %v507 = vmul.f32 1.0, %v506
      %v508 = vrcp.pop %v416
      %v509 = vmul.f32 %v416, %v508
      %v510 = vsub.f32 1.0, %v509
      %v511 = vmul.f32 %v508, %v510
      %v512 = vadd.f32 %v508, %v511
      %vm513 = vweird.f32 %v416
      %vm514 = vweird.f32 %v508
      %vm515 = vmor %vm513, %vm514
      %v516 = vsel %vm515, %v508, %v512
      %v517 = vand.u32 2147483647, %v416
      %vm518 = vcmp.eq.f32.partialorder %v517, 8.507059e+37
      %v519 = vand.u32 %v416, 2147483648
      %v520 = vor.u32 1.1754944e-38, %v519
      %v521 = vsel %vm518, %v520, %v516
      %v522 = vmul.f32 1.0, %v521
      %v523 = vrcp.pop %v417
      %v524 = vmul.f32 %v417, %v523
      %v525 = vsub.f32 1.0, %v524
      %v526 = vmul.f32 %v523, %v525
      %v527 = vadd.f32 %v523, %v526
      %vm528 = vweird.f32 %v417
      %vm529 = vweird.f32 %v523
      %vm530 = vmor %vm528, %vm529
      %v531 = vsel %vm530, %v523, %v527
      %v532 = vand.u32 2147483647, %v417
      %vm533 = vcmp.eq.f32.partialorder %v532, 8.507059e+37
      %v534 = vand.u32 %v417, 2147483648
      %v535 = vor.u32 1.1754944e-38, %v534
      %v536 = vsel %vm533, %v535, %v531
      %v537 = vmul.f32 1.0, %v536
      %v538 = vmul.f32 %v378, %v432
      %v539 = vmul.f32 %v379, %v447
      %v540 = vmul.f32 %v380, %v462
      %v541 = vmul.f32 %v381, %v477
      %v542 = vmul.f32 %v382, %v492
      %v543 = vmul.f32 %v383, %v507
      %v544 = vmul.f32 %v384, %v522
      %v545 = vmul.f32 %v385, %v537
      %546 = vst [vmem:[%s235] sm:$0xff] %v538
      %547 = vst [vmem:[%s235 + $0x8] sm:$0xff] %v539
      %548 = vst [vmem:[%s235 + $0x10] sm:$0xff] %v540
      %549 = vst [vmem:[%s235 + $0x18] sm:$0xff] %v541
      %550 = vst [vmem:[%s235 + $0x20] sm:$0xff] %v542
      %551 = vst [vmem:[%s235 + $0x28] sm:$0xff] %v543
      %552 = vst [vmem:[%s235 + $0x30] sm:$0xff] %v544
      %553 = vst [vmem:[%s235 + $0x38] sm:$0xff] %v545
      %s554 = smul.u32 2, %s20
      %p555 = scmp.lt.s32.totalorder %s19, 1
      %s556 = scalar_select %p555, %s19, 1
      %p557 = scmp.lt.s32.totalorder %s554, 1
      %s558 = scalar_select %p557, %s554, 1
      %s559 = smul.addr %s556, 8
      %s560 = sadd.s32 %s558, %s559
      %s561 = smul.addr %s560, 8
      %s562 = scalar_lea.vmem %s4, %s561
      // Predicated region
      $region37: #{feature_processor.3} parent=35 // pred_check
        %p563 = pneg %p138
      $region38: #{feature_processor.3} parent=35 // pred_check_branch
        %565 = sbr.rel (%p563) target = $region40
      $region39: #{feature_processor.3} parent=35 // pred_region
        %s566 = smul.u32 2, %s20
      $region40: #{feature_processor.3} parent=35 // pred_fallthru
        _
    $region36: #{feature_processor.3} parent=5 // pred_fallthru
      _
    %p567 = scmp.le.s32.totalorder 2, %s10
    // Predicated region
    $region41: #{feature_processor.3} parent=5 // pred_check
      %p568 = pneg %p567
    $region42: #{feature_processor.3} parent=5 // pred_check_branch
      %570 = sbr.rel (%p568) target = $region44
    $region43: #{feature_processor.3} parent=5 // pred_region
      %s571 = ssub.s32 %s10, 2
      // Predicated region
      $region45: #{feature_processor.3} parent=43 // pred_check
        %p572 = pneg %p144
      $region46: #{feature_processor.3} parent=43 // pred_check_branch
        %574 = sbr.rel (%p572) target = $region48
      $region47: #{feature_processor.3} parent=43 // pred_region
        %s575 = smul.u32 2, %s22
        %p576 = scmp.lt.s32.totalorder %s21, 1
        %s577 = scalar_select %p576, %s21, 1
        %p578 = scmp.lt.s32.totalorder %s575, 1
        %s579 = scalar_select %p578, %s575, 1
        %s580 = smul.addr %s577, 8
        %s581 = sadd.s32 %s579, %s580
        %s582 = smul.addr %s581, 8
        %s583 = scalar_lea.vmem %s4, %s582
      $region48: #{feature_processor.3} parent=43 // pred_fallthru
        _
    $region44: #{feature_processor.3} parent=5 // pred_fallthru
      _
  $region6: #{feature_processor.3} parent=0 // loop_footer
    %s14 = sadd.s32 1, %s10
  $region7: #{feature_processor.3} parent=0 // loop_footer_branch
    %9 = sbr.rel target = $region3
  $region8: #{feature_processor.3} parent=0 // loop_exit
    _

</llo_original>
